<compile_context>
chip_gen: v6e
topology: v6e:2x2x1
jax: 0.10.0
libtpu: 0.0.40
codegen_flags: <defaults>
</compile_context>

<pallas_src>
import jax
import jax.numpy as jnp
from jax.experimental import pallas as pl
from jax.experimental.pallas import tpu as pltpu

N_ACTOR = 128     # n_actor (PyTorch default)
N_MAP = 128       # n_map   (PyTorch default)
NUM_MODS = 6
NUM_PRED = 30
REG_DIM = NUM_MODS * NUM_PRED * 2     # 360
PRED_PAD = 384                        # 3 x 128 lanes; pad columns are zero weights

# bf16 MXU operands with f32 accumulation (production default on v5e/v6e/v7x).
USE_BF16_MATMUL = True
_MXU_DTYPE = jnp.bfloat16 if USE_BF16_MATMUL else jnp.float32

# Scoped-VMEM budget: 32 MiB is safe on every generation (v5e scoped default is 16 MiB).
# For real LaneGCN graph sizes raise toward ~100 MiB on v5e/v6e (128 MiB physical);
# keep <= ~48 MiB on v7x (64 MiB physical) and stream adjacency tiles instead.
VMEM_LIMIT = 32 * 1024 * 1024


def _mm(a, b):
    return jnp.dot(a.astype(_MXU_DTYPE), b.astype(_MXU_DTYPE),
                   preferred_element_type=jnp.float32)


def _full_spec(shape):
    # Whole-array block, same block every grid step (resident weight / grid=(1,)).
    return pl.BlockSpec(tuple(shape), lambda i: (0,) * len(shape))


def _row_tile(n):
    # Row-tile size for actor-parallel kernels: multiple of 8 (sublane), capped at 128.
    if n >= 128:
        return 128
    return 8 * ((n + 7) // 8)


# --------------------------------------------------------------------------
# Kernel 1: ActorNet  (conv1 -> relu -> conv2 -> relu -> last frame -> linear -> relu)
# Conv taps pre-collapsed into wide matmuls (weights reshaped in init_params):
#   h1 = relu(x_tail @ W1)            x_tail: last 3 frames, [TM, 9]; W1: [9, 256]
#   h2 = relu(h1 @ W2)                W2: [256, 128]   (K=256 fills the MXU depth)
#   out = relu(h2 @ Wo + bo)
# --------------------------------------------------------------------------
def _actor_kernel(x_ref, w1_ref, b1_ref, w2_ref, b2_ref, wo_ref, bo_ref, o_ref):
    h1 = jnp.maximum(_mm(x_ref[...], w1_ref[...]) + b1_ref[...], 0.0)   # [TM, 256]
    h2 = jnp.maximum(_mm(h1, w2_ref[...]) + b2_ref[...], 0.0)           # [TM, 128]
    o_ref[...] = jnp.maximum(_mm(h2, wo_ref[...]) + bo_ref[...], 0.0).astype(o_ref.dtype)


def actor_net(p, actors_ncw):
    # TODO(synk): canonical ActorNet uses 3 strided Res1d groups + FPN; collapsed to 2 convs.
    n, c, t = actors_ncw.shape
    assert c == 3 and t >= 3, "ActorNet expects 3 input channels and >= 3 time steps"
    x = jnp.transpose(actors_ncw, (0, 2, 1)).reshape(n, t * c)        # time-major, ch-minor
    x_tail = x[:, 3 * (t - 3):].astype(_MXU_DTYPE)                     # [n, 9] last 3 frames

    tm = _row_tile(n)
    n_pad = pl.cdiv(n, tm) * tm
    if n_pad != n:
        x_tail = jnp.pad(x_tail, ((0, n_pad - n), (0, 0)))

    args = (x_tail, p['conv1_w'], p['conv1_b'], p['conv2_w'], p['conv2_b'],
            p['actor_out_w'], p['actor_out_b'])
    out = pl.pallas_call(
        _actor_kernel,
        grid=(n_pad // tm,),
        in_specs=[pl.BlockSpec((tm, 9), lambda i: (i, 0))]
        + [_full_spec(a.shape) for a in args[1:]],
        out_specs=pl.BlockSpec((tm, N_ACTOR), lambda i: (i, 0)),
        out_shape=jax.ShapeDtypeStruct((n_pad, N_ACTOR), _MXU_DTYPE),
        compiler_params=pltpu.CompilerParams(
            dimension_semantics=("parallel",), vmem_limit_bytes=VMEM_LIMIT),
    )(*args)
    return out[:n]                                                     # drop padded rows


# --------------------------------------------------------------------------
# Kernel 2: MapNet + Neck fused (everything stays in VMEM).
# grid=(1,): the chained GCN layers each need the *full* node matrix, so the stage
# cannot be row-tiled without cross-tile exchange.
# TODO(synk): for real LaneGCN graph sizes (Nm ~ 1-5k) the dense [Nm,Nm] adjacencies
# must be streamed in key-dimension tiles (pl.ANY + emit_pipeline) instead of being
# fully VMEM-resident; fine at the toy sizes used here.
# --------------------------------------------------------------------------
def _fusion_kernel(actors_ref, actr_ref, actr_t_ref, nodein_ref, meta_ref,
                   gctr_ref, gctr_t_ref, apre_ref, asuc_ref, aleft_ref, aright_ref,
                   nin_w_ref, nin_b_ref, meta_w_ref, meta_b_ref,
                   gcn_w_ref, gcn_b_ref, att_w_ref, att_b_ref, o_ref):
    def gcn(h, a1, a2, layer):
        # gcn_w[layer] = [Ws | W1 | W2] packed along lanes -> one wide matmul,
        # then free 128-aligned lane slices.
        y_all = _mm(h, gcn_w_ref[layer])                               # [N, 384]
        y = (y_all[:, :N_MAP]
             + _mm(a1, y_all[:, N_MAP:2 * N_MAP])
             + _mm(a2, y_all[:, 2 * N_MAP:3 * N_MAP])
             + gcn_b_ref[layer])
        return jnp.maximum(y, 0.0) + h

    def att(qf, qc, kf, kct, idx, th):
        # Dense distance-gated context aggregation (LaneGCN Att):
        #   mask_ij = ||ctr_i - ctr_j|| <= th ;  out = relu(qWq + mask @ (kWc) + b) + q
        dx = qc[:, 0:1] - kct[0:1, :]
        dy = qc[:, 1:2] - kct[1:2, :]
        mask = ((dx * dx + dy * dy) <= th * th).astype(_MXU_DTYPE)     # {0,1} exact in bf16
        ctx = _mm(kf, att_w_ref[idx, 1])
        y = _mm(qf, att_w_ref[idx, 0]) + _mm(mask, ctx) + att_b_ref[idx]
        return jnp.maximum(y, 0.0) + qf

    actors = actors_ref[...]
    a_ctr, a_ctr_t = actr_ref[...], actr_t_ref[...]
    g_ctr, g_ctr_t = gctr_ref[...], gctr_t_ref[...]
    a_pre, a_suc = apre_ref[...], asuc_ref[...]
    a_left, a_right = aleft_ref[...], aright_ref[...]

    # ---- MapNet ----
    nodes = jnp.maximum(_mm(nodein_ref[...], nin_w_ref[...]) + nin_b_ref[...], 0.0)
    nodes = gcn(nodes, a_pre, a_suc, 0)
    nodes = gcn(nodes, a_pre, a_suc, 1)
    # TODO(synk): canonical MapNet uses multi-hop dilated pre/suc aggregation; 1-hop here.

    # ---- Neck ----
    nodes = nodes + jnp.maximum(_mm(meta_ref[...], meta_w_ref[...]) + meta_b_ref[...], 0.0)
    nodes = att(nodes, g_ctr, actors, a_ctr_t, 0, 6.0)       # A2M
    nodes = gcn(nodes, a_pre, a_suc, 2)                      # M2M (pre/suc)
    nodes = gcn(nodes, a_left, a_right, 3)                   # M2M (left/right)
    actors = att(actors, a_ctr, nodes, g_ctr_t, 1, 6.0)      # M2A
    actors = att(actors, a_ctr, actors, a_ctr_t, 2, 100.0)   # A2A
    # TODO(synk): canonical Att uses per-pair relative-position embedding + sparse
    # index_add; replaced by dense distance-gated aggregation of context features.

    o_ref[...] = actors.astype(o_ref.dtype)


def backbone_neck(p, actors, actor_ctrs, g):
    node_in = jnp.concatenate([g['graph_ctrs'], g['graph_feats']], axis=1).astype(_MXU_DTYPE)
    meta = jnp.concatenate([g['graph_turn'], g['graph_control'][:, None],
                            g['graph_intersect'][:, None]], axis=1).astype(_MXU_DTYPE)
    adj = lambda a: a.astype(_MXU_DTYPE)     # {0,1} adjacency: bf16 is exact, halves DMA
    args = (actors.astype(_MXU_DTYPE), actor_ctrs, actor_ctrs.T, node_in, meta,
            g['graph_ctrs'], g['graph_ctrs'].T,
            adj(g['graph_pre']), adj(g['graph_suc']),
            adj(g['graph_left']), adj(g['graph_right']),
            p['node_in_w'], p['node_in_b'], p['meta_w'], p['meta_b'],
            p['gcn_w'], p['gcn_b'], p['att_w'], p['att_b'])
    n = actors.shape[0]
    return pl.pallas_call(
        _fusion_kernel,
        grid=(1,),
        in_specs=[_full_spec(a.shape) for a in args],
        out_specs=_full_spec((n, N_ACTOR)),
        out_shape=jax.ShapeDtypeStruct((n, N_ACTOR), _MXU_DTYPE),
        compiler_params=pltpu.CompilerParams(
            dimension_semantics=("arbitrary",), vmem_limit_bytes=VMEM_LIMIT),
    )(*args)


# --------------------------------------------------------------------------
# Kernel 3: PredNet head (regression + full classification branch), row-tiled.
# The per-mode loop is gone: the six destination embeddings and six scores are
# batched into block-diagonal matmuls, ending in one lane-dense 128-wide cls store.
# --------------------------------------------------------------------------
def _head_kernel(actors_ref, ph_w_ref, ph_b_ref, pr_w_ref, pr_b_ref,
                 dw_ref, db_ref, bd_w_ref, bd_b_ref, cw_ref, cb_ref,
                 reg_ref, cls_ref):
    h = jnp.maximum(_mm(actors_ref[...], ph_w_ref[...]) + ph_b_ref[...], 0.0)   # [TM, 128]
    reg_ref[...] = (_mm(h, pr_w_ref[...]) + pr_b_ref[...]).astype(reg_ref.dtype)  # [TM, 384]

    # Classification: dest_m = raw last predicted point of mode m (gathered columns of
    # pred_w), fm_m = relu(dest_m @ Wd + bd), cls[:, m] = (fm_m + h) @ Wc + bc.
    dest = _mm(h, dw_ref[...]) + db_ref[...]                                     # [TM, 12]
    fm = jnp.maximum(_mm(dest, bd_w_ref[...]) + bd_b_ref[...], 0.0)              # [TM, 768]
    feat = jnp.concatenate([fm, h], axis=1)                                      # [TM, 896]
    cls_ref[...] = (_mm(feat, cw_ref[...]) + cb_ref[...]).astype(cls_ref.dtype)  # [TM, 128]
    # TODO(synk): canonical PredNet sorts modes by cls score; omitted.


def head(p, actors, actor_idcs, actor_ctrs):
    n = actors.shape[0]
    tm = _row_tile(n)
    n_pad = pl.cdiv(n, tm) * tm
    a = actors.astype(_MXU_DTYPE)
    if n_pad != n:
        a = jnp.pad(a, ((0, n_pad - n), (0, 0)))

    args = (a, p['pred_h_w'], p['pred_h_b'], p['pred_w'], p['pred_b'],
            p['dest_w'], p['dest_b'], p['cls_bd_w'], p['cls_bd_b'],
            p['cls_out_w'], p['cls_out_b'])
    reg_pad, cls_pad = pl.pallas_call(
        _head_kernel,
        grid=(n_pad // tm,),
        in_specs=[pl.BlockSpec((tm, N_ACTOR), lambda i: (i, 0))]
        + [_full_spec(x.shape) for x in args[1:]],
        out_specs=(pl.BlockSpec((tm, PRED_PAD), lambda i: (i, 0)),
                   pl.BlockSpec((tm, N_ACTOR), lambda i: (i, 0))),
        out_shape=(jax.ShapeDtypeStruct((n_pad, PRED_PAD), jnp.float32),
                   jax.ShapeDtypeStruct((n_pad, N_ACTOR), jnp.float32)),
        compiler_params=pltpu.CompilerParams(
            dimension_semantics=("parallel",), vmem_limit_bytes=VMEM_LIMIT),
    )(*args)

    reg = reg_pad[:n, :REG_DIM].reshape(n, NUM_MODS, NUM_PRED, 2) \
        + actor_ctrs[:, None, None, :]
    cls = cls_pad[:n, :NUM_MODS]
    return {'cls': [cls[idx] for idx in actor_idcs],
            'reg': [reg[idx] for idx in actor_idcs]}


# --------------------------------------------------------------------------
# Parameters & model assembly
# --------------------------------------------------------------------------
def init_params(key):
    ks = iter(jax.random.split(key, 64))

    def w(*shape, scale=0.1):
        return scale * jax.random.normal(next(ks), shape, dtype=jnp.float32)

    def b(*shape):
        return jnp.zeros(shape, jnp.float32)

    p = {}

    # ---- ActorNet: conv taps pre-collapsed into wide matmuls ----
    conv1, conv1_b = w(3, 3, N_ACTOR), b(1, N_ACTOR)        # [tap, cin, cout]
    conv2 = w(3, N_ACTOR, N_ACTOR)
    w1a = conv1.reshape(9, N_ACTOR)                          # conv1 @ t=T-2 (taps T-3..T-1)
    w1b = jnp.concatenate([jnp.zeros((3, N_ACTOR), jnp.float32),
                           conv1[0], conv1[1]], axis=0)      # conv1 @ t=T-1 (zero tap T-3 rows)
    p['conv1_w'] = jnp.concatenate([w1a, w1b], axis=1)       # [9, 256]
    p['conv1_b'] = jnp.tile(conv1_b, (1, 2))                 # [1, 256]
    p['conv2_w'] = conv2[:2].reshape(2 * N_ACTOR, N_ACTOR)   # [256, 128]  (K=256)
    p['conv2_b'] = b(1, N_ACTOR)
    p['actor_out_w'], p['actor_out_b'] = w(N_ACTOR, N_ACTOR), b(1, N_ACTOR)

    # ---- MapNet / Neck ----
    p['node_in_w'], p['node_in_b'] = w(4, N_MAP), b(1, N_MAP)
    p['meta_w'], p['meta_b'] = w(4, N_MAP), b(1, N_MAP)
    # GCN triples [Ws|W1|W2] packed into one [128, 384] matrix per layer:
    # layers = [gcn1, gcn2, m2m_pre/suc, m2m_left/right]
    p['gcn_w'], p['gcn_b'] = w(4, N_MAP, 3 * N_MAP), b(4, 1, N_MAP)
    # Attention layers stacked: [a2m, m2a, a2a] x [Wq, Wc]
    p['att_w'], p['att_b'] = w(3, 2, N_ACTOR, N_ACTOR), b(3, 1, N_ACTOR)

    # ---- Head ----
    p['pred_h_w'], p['pred_h_b'] = w(N_ACTOR, N_ACTOR), b(1, N_ACTOR)
    pw, pb = w(N_ACTOR, REG_DIM), b(1, REG_DIM)
    p['pred_w'] = jnp.pad(pw, ((0, 0), (0, PRED_PAD - REG_DIM)))     # lane-pad 360 -> 384
    p['pred_b'] = jnp.pad(pb, ((0, 0), (0, PRED_PAD - REG_DIM)))
    # Destination columns (last predicted point of each mode) gathered from pred_w.
    dest_cols = jnp.array([m * NUM_PRED * 2 + (NUM_PRED - 1) * 2 + d
                           for m in range(NUM_MODS) for d in range(2)], jnp.int32)
    p['dest_w'] = pw[:, dest_cols]                                   # [128, 12]
    p['dest_b'] = pb[:, dest_cols]                                   # [1, 12]
    # Six K=2 dest embeddings batched as one block-diagonal [12, 768] matmul.
    cd_w, cd_b = w(2, N_ACTOR), b(1, N_ACTOR)
    bd = jnp.zeros((2 * NUM_MODS, NUM_MODS * N_ACTOR), jnp.float32)
    for m in range(NUM_MODS):
        bd = bd.at[2 * m:2 * m + 2, m * N_ACTOR:(m + 1) * N_ACTOR].set(cd_w)
    p['cls_bd_w'] = bd                                               # [12, 768]
    p['cls_bd_b'] = jnp.tile(cd_b, (1, NUM_MODS))                    # [1, 768]
    # Final score linear folded into a single lane-dense [896, 128] matmul:
    # columns 0..5 hold the per-mode score, the shared h-term sits in rows 768..895.
    cls_w, cls_b = w(N_ACTOR, 1), b(1, 1)
    cw = jnp.zeros(((NUM_MODS + 1) * N_ACTOR, N_ACTOR), jnp.float32)
    for m in range(NUM_MODS):
        cw = cw.at[m * N_ACTOR:(m + 1) * N_ACTOR, m].set(cls_w[:, 0])
        cw = cw.at[NUM_MODS * N_ACTOR:, m].set(cls_w[:, 0])
    p['cls_out_w'] = cw                                              # [896, 128]
    p['cls_out_b'] = jnp.tile(cls_b, (1, N_ACTOR))                   # [1, 128]

    if USE_BF16_MATMUL:
        for k in ('conv1_w', 'conv2_w', 'actor_out_w', 'node_in_w', 'meta_w',
                  'gcn_w', 'att_w', 'pred_h_w', 'pred_w', 'dest_w',
                  'cls_bd_w', 'cls_out_w'):
            p[k] = p[k].astype(jnp.bfloat16)     # cast once; DMA'd bytes are bf16
    return p


def lanegcn_forward(p, x, train_model=True):
    actors_in = x['actors']['feats']
    actor_idcs = x['actors']['actor_idcs']
    actor_ctrs = jnp.concatenate(x['actors']['actor_ctrs'], axis=0)
    g = x['graph']

    actors = actor_net(p, actors_in)                          # kernel 1 (row-tiled)
    actors = backbone_neck(p, actors, actor_ctrs, g)          # kernel 2 (MapNet + Neck)
    outputs = head(p, actors, actor_idcs, actor_ctrs)         # kernel 3 (row-tiled)

    if train_model:
        rot, orig = x['rot'], x['orig']
        for i in range(len(outputs['reg'])):
            outputs['reg'][i] = (jnp.einsum('nmtd,de->nmte', outputs['reg'][i], rot[i])
                                 + orig[i].reshape(1, 1, 1, -1))
    return outputs


# --------------------------------------------------------------------------
# Synthetic inputs & driver
# --------------------------------------------------------------------------
def make_inputs(key, batch=2, actors_per=4, nodes_per=8, traj_len=20):
    ks = iter(jax.random.split(key, 32))
    n_a, n_m = batch * actors_per, batch * nodes_per

    actors = jax.random.normal(next(ks), (n_a, 3, traj_len), jnp.float32)
    actor_idcs = [jnp.arange(i * actors_per, (i + 1) * actors_per) for i in range(batch)]
    actor_ctrs = [5.0 * jax.random.normal(next(ks), (actors_per, 2), jnp.float32)
                  for _ in range(batch)]

    graph_ctrs = 5.0 * jax.random.normal(next(ks), (n_m, 2), jnp.float32)
    graph_feats = jax.random.normal(next(ks), (n_m, 2), jnp.float32)
    graph_idcs = [jnp.arange(i * nodes_per, (i + 1) * nodes_per) for i in range(batch)]
    graph_turn = jax.random.normal(next(ks), (n_m, 2), jnp.float32)
    graph_control = jax.random.bernoulli(next(ks), 0.3, (n_m,)).astype(jnp.float32)
    graph_intersect = jax.random.bernoulli(next(ks), 0.3, (n_m,)).astype(jnp.float32)

    # block-diagonal (per-scene) dense adjacency matrices
    block = jnp.zeros((n_m, n_m), jnp.float32)
    for i in range(batch):
        s = i * nodes_per
        block = block.at[s:s + nodes_per, s:s + nodes_per].set(1.0)

    def adj():
        return (jax.random.bernoulli(next(ks), 0.25, (n_m, n_m)).astype(jnp.float32) * block)

    angles = jax.random.uniform(next(ks), (batch,), jnp.float32, 0.0, 2.0 * jnp.pi)
    rot = jnp.stack([jnp.stack([jnp.cos(angles), -jnp.sin(angles)], axis=-1),
                     jnp.stack([jnp.sin(angles), jnp.cos(angles)], axis=-1)], axis=-2)
    orig = 10.0 * jax.random.normal(next(ks), (batch, 2), jnp.float32)

    return {
        'actors': {'feats': actors, 'actor_idcs': actor_idcs, 'actor_ctrs': actor_ctrs},
        'graph': {'graph_ctrs': graph_ctrs, 'graph_feats': graph_feats,
                  'graph_idcs': graph_idcs, 'graph_turn': graph_turn,
                  'graph_control': graph_control, 'graph_intersect': graph_intersect,
                  'graph_pre': adj(), 'graph_suc': adj(),
                  'graph_left': adj(), 'graph_right': adj()},
        'rot': rot, 'orig': orig,
    }


if __name__ == "__main__":
    key = jax.random.PRNGKey(0)
    k_in, k_par = jax.random.split(key)
    x = make_inputs(k_in)
    params = init_params(k_par)

    outputs = lanegcn_forward(params, x, train_model=True)
    jax.block_until_ready(outputs['reg'][0])
    jax.block_until_ready(outputs['cls'][0])

    assert outputs['reg'][0].shape == (4, NUM_MODS, NUM_PRED, 2)
    assert outputs['cls'][0].shape == (4, NUM_MODS)
    assert all(jnp.isfinite(r).all() for r in outputs['reg'])
    assert all(jnp.isfinite(c).all() for c in outputs['cls'])
    print("KERNEL_OK")
</pallas_src>

<mosaic_0001>
module attributes {stable_mosaic.version = 11 : i64} {
  func.func @_actor_kernel(%arg0: i32, %arg1: memref<8x9xbf16, #tpu.memory_space<vmem>>, %arg2: memref<9x256xbf16, #tpu.memory_space<vmem>>, %arg3: memref<1x256xf32, #tpu.memory_space<vmem>>, %arg4: memref<256x128xbf16, #tpu.memory_space<vmem>>, %arg5: memref<1x128xf32, #tpu.memory_space<vmem>>, %arg6: memref<128x128xbf16, #tpu.memory_space<vmem>>, %arg7: memref<1x128xf32, #tpu.memory_space<vmem>>, %arg8: memref<8x128xbf16, #tpu.memory_space<vmem>>) attributes {dimension_semantics = [#tpu.dimension_semantics<parallel>], iteration_bounds = array<i64: 1>, scalar_prefetch = 0 : i64, scratch_operands = 0 : i64, tpu.core_type = #tpu.core_type<tc>, window_params = [{transform_indices = @transform_0, window_bounds = array<i64: 8, 9>}, {pipeline_mode = #tpu.pipeline_mode<synchronous>, transform_indices = @transform_1, window_bounds = array<i64: 9, 256>}, {pipeline_mode = #tpu.pipeline_mode<synchronous>, transform_indices = @transform_2, window_bounds = array<i64: 1, 256>}, {pipeline_mode = #tpu.pipeline_mode<synchronous>, transform_indices = @transform_3, window_bounds = array<i64: 256, 128>}, {pipeline_mode = #tpu.pipeline_mode<synchronous>, transform_indices = @transform_4, window_bounds = array<i64: 1, 128>}, {pipeline_mode = #tpu.pipeline_mode<synchronous>, transform_indices = @transform_5, window_bounds = array<i64: 128, 128>}, {pipeline_mode = #tpu.pipeline_mode<synchronous>, transform_indices = @transform_6, window_bounds = array<i64: 1, 128>}, {transform_indices = @transform_7, window_bounds = array<i64: 8, 128>}]} {
    %c0 = arith.constant 0 : index
    %c0_0 = arith.constant 0 : index
    %0 = vector.load %arg1[%c0, %c0_0] : memref<8x9xbf16, #tpu.memory_space<vmem>>, vector<8x9xbf16>
    %c0_1 = arith.constant 0 : index
    %c0_2 = arith.constant 0 : index
    %1 = vector.load %arg2[%c0_1, %c0_2] : memref<9x256xbf16, #tpu.memory_space<vmem>>, vector<9x256xbf16>
    %cst = arith.constant dense<0.000000e+00> : vector<8x256xf32>
    %2 = tpu.matmul %0, %1, %cst {dimension_numbers = #tpu.dot_dimension_numbers<[1], [0], [0], [1], [0, 0, 1, 1], [], []>} : vector<8x9xbf16>, vector<9x256xbf16>, vector<8x256xf32> -> vector<8x256xf32>
    %c0_3 = arith.constant 0 : index
    %c0_4 = arith.constant 0 : index
    %3 = vector.load %arg3[%c0_3, %c0_4] : memref<1x256xf32, #tpu.memory_space<vmem>>, vector<1x256xf32>
    %4 = vector.broadcast %3 : vector<1x256xf32> to vector<8x256xf32>
    %5 = arith.addf %2, %4 : vector<8x256xf32>
    %cst_5 = arith.constant 0.000000e+00 : f32
    %6 = vector.broadcast %cst_5 : f32 to vector<8x256xf32>
    %7 = arith.maximumf %5, %6 : vector<8x256xf32>
    %c0_6 = arith.constant 0 : index
    %c0_7 = arith.constant 0 : index
    %8 = vector.load %arg4[%c0_6, %c0_7] : memref<256x128xbf16, #tpu.memory_space<vmem>>, vector<256x128xbf16>
    %9 = arith.truncf %7 : vector<8x256xf32> to vector<8x256xbf16>
    %cst_8 = arith.constant dense<0.000000e+00> : vector<8x128xf32>
    %10 = tpu.matmul %9, %8, %cst_8 {dimension_numbers = #tpu.dot_dimension_numbers<[1], [0], [0], [1], [0, 0, 1, 1], [], []>} : vector<8x256xbf16>, vector<256x128xbf16>, vector<8x128xf32> -> vector<8x128xf32>
    %c0_9 = arith.constant 0 : index
    %c0_10 = arith.constant 0 : index
    %11 = vector.load %arg5[%c0_9, %c0_10] : memref<1x128xf32, #tpu.memory_space<vmem>>, vector<1x128xf32>
    %12 = vector.broadcast %11 : vector<1x128xf32> to vector<8x128xf32>
    %13 = arith.addf %10, %12 : vector<8x128xf32>
    %cst_11 = arith.constant 0.000000e+00 : f32
    %14 = vector.broadcast %cst_11 : f32 to vector<8x128xf32>
    %15 = arith.maximumf %13, %14 : vector<8x128xf32>
    %c0_12 = arith.constant 0 : index
    %c0_13 = arith.constant 0 : index
    %16 = vector.load %arg6[%c0_12, %c0_13] : memref<128x128xbf16, #tpu.memory_space<vmem>>, vector<128x128xbf16>
    %17 = arith.truncf %15 : vector<8x128xf32> to vector<8x128xbf16>
    %cst_14 = arith.constant dense<0.000000e+00> : vector<8x128xf32>
    %18 = tpu.matmul %17, %16, %cst_14 {dimension_numbers = #tpu.dot_dimension_numbers<[1], [0], [0], [1], [0, 0, 1, 1], [], []>} : vector<8x128xbf16>, vector<128x128xbf16>, vector<8x128xf32> -> vector<8x128xf32>
    %c0_15 = arith.constant 0 : index
    %c0_16 = arith.constant 0 : index
    %19 = vector.load %arg7[%c0_15, %c0_16] : memref<1x128xf32, #tpu.memory_space<vmem>>, vector<1x128xf32>
    %20 = vector.broadcast %19 : vector<1x128xf32> to vector<8x128xf32>
    %21 = arith.addf %18, %20 : vector<8x128xf32>
    %cst_17 = arith.constant 0.000000e+00 : f32
    %22 = vector.broadcast %cst_17 : f32 to vector<8x128xf32>
    %23 = arith.maximumf %21, %22 : vector<8x128xf32>
    %24 = arith.truncf %23 : vector<8x128xf32> to vector<8x128xbf16>
    %c0_18 = arith.constant 0 : index
    %c0_19 = arith.constant 0 : index
    %25 = vector.load %arg8[%c0_18, %c0_19] : memref<8x128xbf16, #tpu.memory_space<vmem>>, vector<8x128xbf16>
    tpu.vector_store %arg8[%c0_18, %c0_19], %24 {strides = array<i32>} : memref<8x128xbf16, #tpu.memory_space<vmem>>, vector<8x128xbf16>,
    return
  }
  func.func @transform_0(%arg0: i32) -> (i32, i32) {
    %c0_i32 = arith.constant 0 : i32
    %c0_i32_0 = arith.constant 0 : i32
    return %arg0, %c0_i32 : i32, i32
  }
  func.func @transform_1(%arg0: i32) -> (i32, i32) {
    %c0_i32 = arith.constant 0 : i32
    %c0_i32_0 = arith.constant 0 : i32
    %c0_i32_1 = arith.constant 0 : i32
    return %c0_i32, %c0_i32_0 : i32, i32
  }
  func.func @transform_2(%arg0: i32) -> (i32, i32) {
    %c0_i32 = arith.constant 0 : i32
    %c0_i32_0 = arith.constant 0 : i32
    %c0_i32_1 = arith.constant 0 : i32
    return %c0_i32, %c0_i32_0 : i32, i32
  }
  func.func @transform_3(%arg0: i32) -> (i32, i32) {
    %c0_i32 = arith.constant 0 : i32
    %c0_i32_0 = arith.constant 0 : i32
    %c0_i32_1 = arith.constant 0 : i32
    return %c0_i32, %c0_i32_0 : i32, i32
  }
  func.func @transform_4(%arg0: i32) -> (i32, i32) {
    %c0_i32 = arith.constant 0 : i32
    %c0_i32_0 = arith.constant 0 : i32
    %c0_i32_1 = arith.constant 0 : i32
    return %c0_i32, %c0_i32_0 : i32, i32
  }
  func.func @transform_5(%arg0: i32) -> (i32, i32) {
    %c0_i32 = arith.constant 0 : i32
    %c0_i32_0 = arith.constant 0 : i32
    %c0_i32_1 = arith.constant 0 : i32
    return %c0_i32, %c0_i32_0 : i32, i32
  }
  func.func @transform_6(%arg0: i32) -> (i32, i32) {
    %c0_i32 = arith.constant 0 : i32
    %c0_i32_0 = arith.constant 0 : i32
    %c0_i32_1 = arith.constant 0 : i32
    return %c0_i32, %c0_i32_0 : i32, i32
  }
  func.func @transform_7(%arg0: i32) -> (i32, i32) {
    %c0_i32 = arith.constant 0 : i32
    %c0_i32_0 = arith.constant 0 : i32
    return %arg0, %c0_i32 : i32, i32
  }
}

</mosaic_0001>

<llo_original>
// kernel: tpu_custom_call.1
$region0: #{tpu_custom_call.1}
  #allocation0 [shape = 'u32[]', space=smem, size = 0x4, offset = 0x4, fixed_abs, tag = 'smem constant byte address 0x4 - core index']
  #allocation1 [shape = 'u32[144,128]{1,0:T(1,128)}', space=vmem, size = 0x12000, scoped, tag = 'internal scratch']
  %s0 = inlined_call_operand.hbm [shape: bf16[8,9], index: 0, kind: input, shape index: {}]
  %s1 = inlined_call_operand.hbm [shape: bf16[9,256], index: 1, kind: input, shape index: {}]
  %s2 = inlined_call_operand.vmem [shape: f32[1,256], index: 2, kind: input, shape index: {}]
  %s3 = inlined_call_operand.hbm [shape: bf16[256,128], index: 3, kind: input, shape index: {}]
  %s4 = inlined_call_operand.vmem [shape: f32[1,128], index: 4, kind: input, shape index: {}]
  %s5 = inlined_call_operand.hbm [shape: bf16[128,128], index: 5, kind: input, shape index: {}]
  %s6 = inlined_call_operand.vmem [shape: f32[1,128], index: 6, kind: input, shape index: {}]
  %s7 = inlined_call_operand.hbm [shape: bf16[8,128], index: 7, kind: output, shape index: {}]
  %s8 = sld [smem:[#allocation0]]
  $region54: #{tpu_custom_call.1} parent=0
    _
  %s10 = ssub.s32 1, %s8
  %s11 = scalar_select 0, %s10, %s8
  $region1: #{tpu_custom_call.1} parent=0
    #allocation2 [shape = 'u8[2048]{0}', space=vmem, size = 0x800, scoped, tag = 'input window, operand 0, single buffered']
    #allocation3 [shape = 's32[1]{0}', space=sflag, size = 0x4, scoped, tag = 'scoped memory for tpu_custom_call.1']
    #allocation4 [shape = 's32[1]{0}', space=sflag, size = 0x4, scoped, tag = 'scoped memory for tpu_custom_call.1']
    #allocation5 [shape = 'u8[8192]{0}', space=vmem, size = 0x2000, scoped, tag = 'input window, operand 1, single buffered']
    #allocation6 [shape = 's32[1]{0}', space=sflag, size = 0x4, scoped, tag = 'scoped memory for tpu_custom_call.1']
    #allocation7 [shape = 'u8[65536]{0}', space=vmem, size = 0x10000, scoped, tag = 'input window, operand 3, single buffered']
    #allocation8 [shape = 'u8[32768]{0}', space=vmem, size = 0x8000, scoped, tag = 'input window, operand 5, single buffered']
    #allocation9 [shape = 's32[1]{0}', space=sflag, size = 0x4, scoped, tag = 'scoped memory for tpu_custom_call.1']
    #allocation10 [shape = 'u8[2048]{0}', space=vmem, size = 0x800, scoped, tag = 'output window, operand 0, single buffered']
    %12 = vsyncpa [#allocation3], 0
    %13 = vsyncpa [#allocation6], 0
    %14 = vsyncpa [#allocation9], 0
    %15 = vsyncpa [#allocation4], 0
    // Predicated region
    $region2: #{tpu_custom_call.1} parent=1 // pred_check
      _
    $region3: #{tpu_custom_call.1} parent=1 // pred_check_branch
      %17 = sbr.rel (0) target = $region5
    $region4: #{tpu_custom_call.1} parent=1 // pred_region
      %s19 = ssub.s32 64, 64
      %20 = vsyncadd [#allocation3], %s19
      %s22 = sshll.u32 [#allocation2], 4
      %s23 = int_to_ptr.vmem [resolvable:$true] %s22
      %25 = dma.hbm_to_vmem [thread:$0]  %s0, 64, %s23, [#allocation3]
    $region5: #{tpu_custom_call.1} parent=1 // pred_fallthru
      _
    // Predicated region
    $region6: #{tpu_custom_call.1} parent=1 // pred_check
      _
    $region7: #{tpu_custom_call.1} parent=1 // pred_check_branch
      %27 = sbr.rel (0) target = $region9
    $region8: #{tpu_custom_call.1} parent=1 // pred_region
      %s29 = ssub.s32 256, 256
      %30 = vsyncadd [#allocation6], %s29
      %s31 = sshll.u32 [#allocation5], 4
      %s32 = int_to_ptr.vmem [resolvable:$true] %s31
      %37 = dma.hbm_to_vmem [thread:$0]  %s1, 256, %s32, [#allocation6], 128, 128, 8
    $region9: #{tpu_custom_call.1} parent=1 // pred_fallthru
      _
    // Predicated region
    $region10: #{tpu_custom_call.1} parent=1 // pred_check
      _
    $region11: #{tpu_custom_call.1} parent=1 // pred_check_branch
      %39 = sbr.rel (0) target = $region13
    $region12: #{tpu_custom_call.1} parent=1 // pred_region
      _
    $region13: #{tpu_custom_call.1} parent=1 // pred_fallthru
      _
    // Predicated region
    $region14: #{tpu_custom_call.1} parent=1 // pred_check
      _
    $region15: #{tpu_custom_call.1} parent=1 // pred_check_branch
      %41 = sbr.rel (0) target = $region17
    $region16: #{tpu_custom_call.1} parent=1 // pred_region
      %s43 = ssub.s32 2048, 2048
      %44 = vsyncadd [#allocation6], %s43
      %s45 = sshll.u32 [#allocation7], 4
      %s46 = int_to_ptr.vmem [resolvable:$true] %s45
      %51 = dma.hbm_to_vmem [thread:$0]  %s3, 2048, %s46, [#allocation6], 64, 64, 4
    $region17: #{tpu_custom_call.1} parent=1 // pred_fallthru
      _
    // Predicated region
    $region18: #{tpu_custom_call.1} parent=1 // pred_check
      _
    $region19: #{tpu_custom_call.1} parent=1 // pred_check_branch
      %53 = sbr.rel (0) target = $region21
    $region20: #{tpu_custom_call.1} parent=1 // pred_region
      _
    $region21: #{tpu_custom_call.1} parent=1 // pred_fallthru
      _
    // Predicated region
    $region22: #{tpu_custom_call.1} parent=1 // pred_check
      _
    $region23: #{tpu_custom_call.1} parent=1 // pred_check_branch
      %55 = sbr.rel (0) target = $region25
    $region24: #{tpu_custom_call.1} parent=1 // pred_region
      %s57 = ssub.s32 1024, 1024
      %58 = vsyncadd [#allocation9], %s57
      %s59 = sshll.u32 [#allocation8], 4
      %s60 = int_to_ptr.vmem [resolvable:$true] %s59
      %65 = dma.hbm_to_vmem [thread:$0]  %s5, 1024, %s60, [#allocation9], 64, 64, 4
    $region25: #{tpu_custom_call.1} parent=1 // pred_fallthru
      _
    // Predicated region
    $region26: #{tpu_custom_call.1} parent=1 // pred_check
      _
    $region27: #{tpu_custom_call.1} parent=1 // pred_check_branch
      %67 = sbr.rel (0) target = $region29
    $region28: #{tpu_custom_call.1} parent=1 // pred_region
      _
    $region29: #{tpu_custom_call.1} parent=1 // pred_fallthru
      _
    // Predicated region
    $region30: #{tpu_custom_call.1} parent=1 // pred_check
      _
    $region31: #{tpu_custom_call.1} parent=1 // pred_check_branch
      %69 = sbr.rel (0) target = $region33
    $region32: #{tpu_custom_call.1} parent=1 // pred_region
      %70 = dma.done [#allocation3], 64
    $region33: #{tpu_custom_call.1} parent=1 // pred_fallthru
      _
    // Predicated region
    $region34: #{tpu_custom_call.1} parent=1 // pred_check
      _
    $region35: #{tpu_custom_call.1} parent=1 // pred_check_branch
      %72 = sbr.rel (0) target = $region37
    $region36: #{tpu_custom_call.1} parent=1 // pred_region
      %73 = dma.done [#allocation6], 256
    $region37: #{tpu_custom_call.1} parent=1 // pred_fallthru
      _
    // Predicated region
    $region38: #{tpu_custom_call.1} parent=1 // pred_check
      _
    $region39: #{tpu_custom_call.1} parent=1 // pred_check_branch
      %75 = sbr.rel (0) target = $region41
    $region40: #{tpu_custom_call.1} parent=1 // pred_region
      %76 = dma.done [#allocation6], 2048
    $region41: #{tpu_custom_call.1} parent=1 // pred_fallthru
      _
    // Predicated region
    $region42: #{tpu_custom_call.1} parent=1 // pred_check
      _
    $region43: #{tpu_custom_call.1} parent=1 // pred_check_branch
      %78 = sbr.rel (0) target = $region45
    $region44: #{tpu_custom_call.1} parent=1 // pred_region
      %79 = dma.done [#allocation9], 1024
    $region45: #{tpu_custom_call.1} parent=1 // pred_fallthru
      _
    %v81 = vld [vmem:[#allocation2] sm:$0xf]
    %v82 = vld [vmem:[#allocation5] sm:$0xff]
    %v83 = vld [vmem:[#allocation5 + $0x8] sm:$0x11]
    %v84 = vld [vmem:[%s2] sm:$0x3]
    %v86 = vlaneseq
    %v87 = vshrl.u32 %v86, 7
    %v88 = vsub.s32 0, %v87
    %v89 = vrot.slane %v84, %v88
    %v90 = vlaneseq
    %v91 = vshrl.u32 %v90, 7
    %v92 = vsub.s32 1, %v91
    %v93 = vrot.slane %v84, %v92
    %v98 = vunpack.c.l.b16 %v82
    %v99 = vunpack.c.h.b16 %v82
    %v100 = vunpack.c.l.b16 %v83
    %v101 = vunpack.c.h.b16 %v83
    %v102 = vpack.c.b16 %v100, %v98
    %v103 = vpack.c.b16 %v101, %v99
    %vm104 = vcmask 72704
    %v106 = vsel %vm104, %v81, 0
    %vm108 = vcmask 1043456
    %vm109 = vcmask 1044480
    %v110 = vsel %vm108, 4294967295, 65535
    %v111 = vsel %vm109, %v110, 0
    %v113 = vand.u32 %v102, %v111
    %v116 = vand.u32 %v103, %v111
    %118 = vmatprep.subr.bf16.mxu0 0
    %119 = vmatpush1.bf16.msra.mxu0 0
    %120 = vmatprep.subr.bf16.mxu0 0
    %121 = vmatpush1.bf16.msra.mxu0 0
    %122 = vmatprep.subr.bf16.mxu0 0
    %123 = vmatpush1.bf16.msra.mxu0 0
    %124 = vmatprep.subr.bf16.mxu0 0
    %125 = vmatpush1.bf16.msra.mxu0 0
    %126 = vmatprep.subr.bf16.mxu0 0
    %127 = vmatpush1.bf16.msra.mxu0 0
    %128 = vmatprep.subr.bf16.mxu0 0
    %129 = vmatpush1.bf16.msra.mxu0 0
    %130 = vmatprep.subr.bf16.mxu0 0
    %131 = vmatpush1.bf16.msra.mxu0 0
    %132 = vmatprep.subr.bf16.mxu0 %v116
    %133 = vmatpush1.bf16.msra.mxu0 %v113
    %134 = vmatprep.subr.bf16.mxu0 0
    %135 = vmatpush2.bf16.msra.mxu0 0
    %136 = vmatprep.subr.bf16.mxu0 0
    %137 = vmatpush2.bf16.msra.mxu0 0
    %138 = vmatprep.subr.bf16.mxu0 0
    %139 = vmatpush2.bf16.msra.mxu0 0
    %140 = vmatprep.subr.bf16.mxu0 0
    %141 = vmatpush2.bf16.msra.mxu0 0
    %142 = vmatprep.subr.bf16.mxu0 0
    %143 = vmatpush2.bf16.msra.mxu0 0
    %144 = vmatprep.subr.bf16.mxu0 0
    %145 = vmatpush2.bf16.msra.mxu0 0
    %146 = vmatprep.subr.bf16.mxu0 0
    %147 = vmatpush2.bf16.msra.mxu0 0
    %148 = vmatprep.subr.bf16.mxu0 0
    %149 = vmatpush2.bf16.msra.mxu0 0
    %150 = vmatprep.mubr.bf16.mxu0 0
    %151 = vmatmul.mubr.bf16.gmra.mxu0 %v106
    %v152 = vpop.f32.mrf.mxu0
    %v153 = vadd.f32 %v89, %v152
    %v154 = vpop.f32.mrf.mxu0
    %v155 = vadd.f32 %v93, %v154
    %v156 = vpop.f32.mrf.mxu0
    %v157 = vpop.f32.mrf.mxu0
    %158 = vdwg.mxu0
    %v159 = vmax.f32 %v153, 0.0
    %v160 = vmax.f32 %v155, 0.0
    %v161 = vld [vmem:[#allocation7] sm:$0xf]
    %v162 = vld [vmem:[#allocation7 + $0x4] sm:$0xf]
    %v163 = vld [vmem:[#allocation7 + $0x8] sm:$0xf]
    %v164 = vld [vmem:[#allocation7 + $0xc] sm:$0xf]
    %v165 = vld [vmem:[#allocation7 + $0x10] sm:$0xf]
    %v166 = vld [vmem:[#allocation7 + $0x14] sm:$0xf]
    %v167 = vld [vmem:[#allocation7 + $0x18] sm:$0xf]
    %v168 = vld [vmem:[#allocation7 + $0x1c] sm:$0xf]
    %v169 = vld [vmem:[#allocation7 + $0x20] sm:$0xf]
    %v170 = vld [vmem:[#allocation7 + $0x24] sm:$0xf]
    %v171 = vld [vmem:[#allocation7 + $0x28] sm:$0xf]
    %v172 = vld [vmem:[#allocation7 + $0x2c] sm:$0xf]
    %v173 = vld [vmem:[#allocation7 + $0x30] sm:$0xf]
    %v174 = vld [vmem:[#allocation7 + $0x34] sm:$0xf]
    %v175 = vld [vmem:[#allocation7 + $0x38] sm:$0xf]
    %v176 = vld [vmem:[#allocation7 + $0x3c] sm:$0xf]
    %v177 = vld [vmem:[#allocation7 + $0x40] sm:$0xf]
    %v178 = vld [vmem:[#allocation7 + $0x44] sm:$0xf]
    %v179 = vld [vmem:[#allocation7 + $0x48] sm:$0xf]
    %v180 = vld [vmem:[#allocation7 + $0x4c] sm:$0xf]
    %v181 = vld [vmem:[#allocation7 + $0x50] sm:$0xf]
    %v182 = vld [vmem:[#allocation7 + $0x54] sm:$0xf]
    %v183 = vld [vmem:[#allocation7 + $0x58] sm:$0xf]
    %v184 = vld [vmem:[#allocation7 + $0x5c] sm:$0xf]
    %v185 = vld [vmem:[#allocation7 + $0x60] sm:$0xf]
    %v186 = vld [vmem:[#allocation7 + $0x64] sm:$0xf]
    %v187 = vld [vmem:[#allocation7 + $0x68] sm:$0xf]
    %v188 = vld [vmem:[#allocation7 + $0x6c] sm:$0xf]
    %v189 = vld [vmem:[#allocation7 + $0x70] sm:$0xf]
    %v190 = vld [vmem:[#allocation7 + $0x74] sm:$0xf]
    %v191 = vld [vmem:[#allocation7 + $0x78] sm:$0xf]
    %v192 = vld [vmem:[#allocation7 + $0x7c] sm:$0xf]
    %v193 = vpack.c.bf16 %v159, %v159
    %v194 = vpack.c.bf16 %v160, %v160
    %v195 = vld [vmem:[%s4] sm:$0x1]
    %v197 = vlaneseq
    %v198 = vshrl.u32 %v197, 7
    %v199 = vsub.s32 0, %v198
    %v200 = vrot.slane %v195, %v199
    %v234 = vunpack.c.l.b16 %v161
    %v235 = vunpack.c.l.b16 %v162
    %v236 = vunpack.c.l.b16 %v163
    %v237 = vunpack.c.l.b16 %v164
    %v238 = vunpack.c.l.b16 %v165
    %v239 = vunpack.c.l.b16 %v166
    %v240 = vunpack.c.l.b16 %v167
    %v241 = vunpack.c.l.b16 %v168
    %v242 = vunpack.c.l.b16 %v169
    %v243 = vunpack.c.l.b16 %v170
    %v244 = vunpack.c.l.b16 %v171
    %v245 = vunpack.c.l.b16 %v172
    %v246 = vunpack.c.l.b16 %v173
    %v247 = vunpack.c.l.b16 %v174
    %v248 = vunpack.c.l.b16 %v175
    %v249 = vunpack.c.l.b16 %v176
    %v250 = vunpack.c.l.b16 %v177
    %v251 = vunpack.c.l.b16 %v178
    %v252 = vunpack.c.l.b16 %v179
    %v253 = vunpack.c.l.b16 %v180
    %v254 = vunpack.c.l.b16 %v181
    %v255 = vunpack.c.l.b16 %v182
    %v256 = vunpack.c.l.b16 %v183
    %v257 = vunpack.c.l.b16 %v184
    %v258 = vunpack.c.l.b16 %v185
    %v259 = vunpack.c.l.b16 %v186
    %v260 = vunpack.c.l.b16 %v187
    %v261 = vunpack.c.l.b16 %v188
    %v262 = vunpack.c.l.b16 %v189
    %v263 = vunpack.c.l.b16 %v190
    %v264 = vunpack.c.l.b16 %v191
    %v265 = vunpack.c.l.b16 %v192
    %v266 = vpack.c.b16 %v235, %v234
    %v267 = vpack.c.b16 %v237, %v236
    %v268 = vpack.c.b16 %v239, %v238
    %v269 = vpack.c.b16 %v241, %v240
    %v270 = vpack.c.b16 %v243, %v242
    %v271 = vpack.c.b16 %v245, %v244
    %v272 = vpack.c.b16 %v247, %v246
    %v273 = vpack.c.b16 %v249, %v248
    %v274 = vpack.c.b16 %v251, %v250
    %v275 = vpack.c.b16 %v253, %v252
    %v276 = vpack.c.b16 %v255, %v254
    %v277 = vpack.c.b16 %v257, %v256
    %v278 = vpack.c.b16 %v259, %v258
    %v279 = vpack.c.b16 %v261, %v260
    %v280 = vpack.c.b16 %v263, %v262
    %v281 = vpack.c.b16 %v265, %v264
    %298 = vmatprep.subr.bf16.mxu0 0
    %299 = vmatpush1.bf16.msra.mxu0 %v273
    %300 = vmatprep.subr.bf16.mxu0 0
    %301 = vmatpush1.bf16.msra.mxu0 %v272
    %302 = vmatprep.subr.bf16.mxu0 0
    %303 = vmatpush1.bf16.msra.mxu0 %v271
    %304 = vmatprep.subr.bf16.mxu0 0
    %305 = vmatpush1.bf16.msra.mxu0 %v270
    %306 = vmatprep.subr.bf16.mxu0 0
    %307 = vmatpush1.bf16.msra.mxu0 %v269
    %308 = vmatprep.subr.bf16.mxu0 0
    %309 = vmatpush1.bf16.msra.mxu0 %v268
    %310 = vmatprep.subr.bf16.mxu0 0
    %311 = vmatpush1.bf16.msra.mxu0 %v267
    %312 = vmatprep.subr.bf16.mxu0 0
    %313 = vmatpush1.bf16.msra.mxu0 %v266
    %314 = vmatprep.subr.bf16.mxu0 0
    %315 = vmatpush2.bf16.msra.mxu0 %v281
    %316 = vmatprep.subr.bf16.mxu0 0
    %317 = vmatpush2.bf16.msra.mxu0 %v280
    %318 = vmatprep.subr.bf16.mxu0 0
    %319 = vmatpush2.bf16.msra.mxu0 %v279
    %320 = vmatprep.subr.bf16.mxu0 0
    %321 = vmatpush2.bf16.msra.mxu0 %v278
    %322 = vmatprep.subr.bf16.mxu0 0
    %323 = vmatpush2.bf16.msra.mxu0 %v277
    %324 = vmatprep.subr.bf16.mxu0 0
    %325 = vmatpush2.bf16.msra.mxu0 %v276
    %326 = vmatprep.subr.bf16.mxu0 0
    %327 = vmatpush2.bf16.msra.mxu0 %v275
    %328 = vmatprep.subr.bf16.mxu0 0
    %329 = vmatpush2.bf16.msra.mxu0 %v274
    %330 = vmatprep.mubr.bf16.mxu0 %v194
    %331 = vmatmul.mubr.bf16.gmra.mxu0 %v193
    %v332 = vpop.f32.mrf.mxu0
    %v333 = vadd.f32 %v200, %v332
    %v334 = vpop.f32.mrf.mxu0
    %v335 = vpop.f32.mrf.mxu0
    %v336 = vpop.f32.mrf.mxu0
    %337 = vdwg.mxu0
    %v338 = vmax.f32 %v333, 0.0
    %v339 = vld [vmem:[#allocation8] sm:$0xf]
    %v340 = vld [vmem:[#allocation8 + $0x4] sm:$0xf]
    %v341 = vld [vmem:[#allocation8 + $0x8] sm:$0xf]
    %v342 = vld [vmem:[#allocation8 + $0xc] sm:$0xf]
    %v343 = vld [vmem:[#allocation8 + $0x10] sm:$0xf]
    %v344 = vld [vmem:[#allocation8 + $0x14] sm:$0xf]
    %v345 = vld [vmem:[#allocation8 + $0x18] sm:$0xf]
    %v346 = vld [vmem:[#allocation8 + $0x1c] sm:$0xf]
    %v347 = vld [vmem:[#allocation8 + $0x20] sm:$0xf]
    %v348 = vld [vmem:[#allocation8 + $0x24] sm:$0xf]
    %v349 = vld [vmem:[#allocation8 + $0x28] sm:$0xf]
    %v350 = vld [vmem:[#allocation8 + $0x2c] sm:$0xf]
    %v351 = vld [vmem:[#allocation8 + $0x30] sm:$0xf]
    %v352 = vld [vmem:[#allocation8 + $0x34] sm:$0xf]
    %v353 = vld [vmem:[#allocation8 + $0x38] sm:$0xf]
    %v354 = vld [vmem:[#allocation8 + $0x3c] sm:$0xf]
    %v355 = vpack.c.bf16 %v338, %v338
    %v356 = vld [vmem:[%s6] sm:$0x1]
    %v358 = vlaneseq
    %v359 = vshrl.u32 %v358, 7
    %v360 = vsub.s32 0, %v359
    %v361 = vrot.slane %v356, %v360
    %v379 = vunpack.c.l.b16 %v339
    %v380 = vunpack.c.l.b16 %v340
    %v381 = vunpack.c.l.b16 %v341
    %v382 = vunpack.c.l.b16 %v342
    %v383 = vunpack.c.l.b16 %v343
    %v384 = vunpack.c.l.b16 %v344
    %v385 = vunpack.c.l.b16 %v345
    %v386 = vunpack.c.l.b16 %v346
    %v387 = vunpack.c.l.b16 %v347
    %v388 = vunpack.c.l.b16 %v348
    %v389 = vunpack.c.l.b16 %v349
    %v390 = vunpack.c.l.b16 %v350
    %v391 = vunpack.c.l.b16 %v351
    %v392 = vunpack.c.l.b16 %v352
    %v393 = vunpack.c.l.b16 %v353
    %v394 = vunpack.c.l.b16 %v354
    %v395 = vpack.c.b16 %v380, %v379
    %v396 = vpack.c.b16 %v382, %v381
    %v397 = vpack.c.b16 %v384, %v383
    %v398 = vpack.c.b16 %v386, %v385
    %v399 = vpack.c.b16 %v388, %v387
    %v400 = vpack.c.b16 %v390, %v389
    %v401 = vpack.c.b16 %v392, %v391
    %v402 = vpack.c.b16 %v394, %v393
    %411 = vmatprep.subr.bf16.mxu0 0
    %412 = vmatpush1.bf16.msra.mxu0 %v402
    %413 = vmatprep.subr.bf16.mxu0 0
    %414 = vmatpush1.bf16.msra.mxu0 %v401
    %415 = vmatprep.subr.bf16.mxu0 0
    %416 = vmatpush1.bf16.msra.mxu0 %v400
    %417 = vmatprep.subr.bf16.mxu0 0
    %418 = vmatpush1.bf16.msra.mxu0 %v399
    %419 = vmatprep.subr.bf16.mxu0 0
    %420 = vmatpush1.bf16.msra.mxu0 %v398
    %421 = vmatprep.subr.bf16.mxu0 0
    %422 = vmatpush1.bf16.msra.mxu0 %v397
    %423 = vmatprep.subr.bf16.mxu0 0
    %424 = vmatpush1.bf16.msra.mxu0 %v396
    %425 = vmatprep.subr.bf16.mxu0 0
    %426 = vmatpush1.bf16.msra.mxu0 %v395
    %427 = vmatprep.subr.bf16.mxu0 0
    %428 = vmatpush2.bf16.msra.mxu0 0
    %429 = vmatprep.subr.bf16.mxu0 0
    %430 = vmatpush2.bf16.msra.mxu0 0
    %431 = vmatprep.subr.bf16.mxu0 0
    %432 = vmatpush2.bf16.msra.mxu0 0
    %433 = vmatprep.subr.bf16.mxu0 0
    %434 = vmatpush2.bf16.msra.mxu0 0
    %435 = vmatprep.subr.bf16.mxu0 0
    %436 = vmatpush2.bf16.msra.mxu0 0
    %437 = vmatprep.subr.bf16.mxu0 0
    %438 = vmatpush2.bf16.msra.mxu0 0
    %439 = vmatprep.subr.bf16.mxu0 0
    %440 = vmatpush2.bf16.msra.mxu0 0
    %441 = vmatprep.subr.bf16.mxu0 0
    %442 = vmatpush2.bf16.msra.mxu0 0
    %443 = vmatprep.mubr.bf16.mxu0 0
    %444 = vmatmul.mubr.bf16.gmra.mxu0 %v355
    %v445 = vpop.f32.mrf.mxu0
    %v446 = vadd.f32 %v361, %v445
    %v447 = vpop.f32.mrf.mxu0
    %v448 = vpop.f32.mrf.mxu0
    %v449 = vpop.f32.mrf.mxu0
    %450 = vdwg.mxu0
    %v451 = vmax.f32 %v446, 0.0
    %v452 = vpack.c.bf16 %v451, %v451
    %453 = vst [vmem:[#allocation10] sm:$0xf] %v452
    // Predicated region
    $region46: #{tpu_custom_call.1} parent=1 // pred_check
      _
    $region47: #{tpu_custom_call.1} parent=1 // pred_check_branch
      %455 = sbr.rel (0) target = $region49
    $region48: #{tpu_custom_call.1} parent=1 // pred_region
      %s457 = ssub.s32 64, 64
      %458 = vsyncadd [#allocation4], %s457
      %s460 = sshll.u32 [#allocation10], 4
      %s461 = int_to_ptr.vmem [resolvable:$true] %s460
      %463 = dma.vmem_to_hbm [thread:$0]  %s461, 64, %s7, [#allocation4]
    $region49: #{tpu_custom_call.1} parent=1 // pred_fallthru
      _
    // Predicated region
    $region50: #{tpu_custom_call.1} parent=1 // pred_check
      _
    $region51: #{tpu_custom_call.1} parent=1 // pred_check_branch
      %465 = sbr.rel (0) target = $region53
    $region52: #{tpu_custom_call.1} parent=1 // pred_region
      %466 = dma.done [#allocation4], 64
    $region53: #{tpu_custom_call.1} parent=1 // pred_fallthru
      _
    %467 = vsyncpa [#allocation3], 1
    %468 = vsyncpa [#allocation6], 1
    %469 = vsyncpa [#allocation9], 1
    %470 = vsyncpa [#allocation4], 1

</llo_original>
